<compile_context>
chip_gen: v7x
topology: tpu7x:2x2x1
jax: 0.10.0
libtpu: 0.0.40
codegen_flags: <defaults>
</compile_context>

<pallas_src>
import functools

import jax
import jax.numpy as jnp
from jax.experimental import pallas as pl
from jax.experimental.pallas import tpu as pltpu

LANE = 128
_TILE_R_TARGET = 1024                       # rows per tile (measured HBM-roofline knee)
_VMEM_STREAM_BUDGET = 10 * 1024 * 1024      # double-buffered stream tiles
_VMEM_LIMIT_BYTES = 20 * 1024 * 1024        # explicit scoped-VMEM limit (safe on v5e..v7x)


def _cores_per_device():
    try:
        dev = jax.devices()[0]
        return max(1, int(getattr(dev, "num_cores", 1) or 1))
    except Exception:
        return 1


def _masked_l1_kernel(pred_ref, tgt_ref, depth_ref, abs_ref, cnt_ref,
                      acc_ref, cnt_acc_ref, *, nblk, tile_r, acc_rows,
                      rows_total, need_count, need_row_mask):
    """pred_ref: (S, tile_r, LANE); tgt_ref/depth_ref: (tile_r, LANE).

    abs_ref: (1, S) SMEM per-shard |diff| sums.
    cnt_ref: (1, 1) SMEM per-shard valid-element count (int32).
    acc_ref: (S, acc_rows, LANE) f32 vreg-sized accumulator.
    cnt_acc_ref: (acc_rows, LANE) i32 vreg-sized count accumulator.
    """
    r = pl.program_id(1)
    nr = pl.num_programs(1)
    n_preds = acc_ref.shape[0]

    @pl.when(r == 0)
    def _():
        acc_ref[...] = jnp.zeros_like(acc_ref)
        if need_count:
            cnt_acc_ref[...] = jnp.zeros_like(cnt_acc_ref)

    # Validity mask computed in-kernel from depth (NaN -> invalid).
    valid = jnp.logical_not(jnp.isnan(depth_ref[...]))          # (tile_r, LANE)
    if need_row_mask:
        # Mask rows of the (possibly partial / out-of-range) last tile.
        row0 = (pl.program_id(0) * nblk + r) * tile_r
        rows = row0 + jax.lax.broadcasted_iota(jnp.int32, (tile_r, LANE), 0)
        valid = jnp.logical_and(valid, rows < rows_total)

    tgt = tgt_ref[...].astype(jnp.float32)                      # (tile_r, LANE)
    pred = pred_ref[...].astype(jnp.float32)                    # (S, tile_r, LANE)

    d = jnp.abs(pred - tgt[None, :, :])
    # `where` (not multiply) so NaN/Inf at invalid positions are excluded,
    # matching PyTorch's boolean-mask gather semantics exactly.
    d = jnp.where(valid[None, :, :], d, 0.0)

    # Fold the tile's sublane groups into the vreg-sized accumulator (pure VPU adds).
    if tile_r != acc_rows:
        folds = tile_r // acc_rows
        d = d.reshape(n_preds, folds, acc_rows, LANE).sum(axis=1)
    acc_ref[...] += d

    if need_count:
        vcnt = valid.astype(jnp.int32)
        if tile_r != acc_rows:
            vcnt = vcnt.reshape(tile_r // acc_rows, acc_rows, LANE).sum(axis=0)
        cnt_acc_ref[...] += vcnt

    # Cross-lane reduce + SMEM scalar writes only at the last step (S+1 vregs).
    @pl.when(r == nr - 1)
    def _():
        if need_count:
            cnt_ref[0, 0] = jnp.sum(cnt_acc_ref[...])
        else:
            cnt_ref[0, 0] = jnp.array(0, jnp.int32)
        for s in range(n_preds):                                # static unroll, S small
            abs_ref[0, s] = jnp.sum(acc_ref[s])


def _masked_l1_sums(pred3, tgt2, depth2, *, tile_r, num_shards, need_count):
    """pred3: [S, R, 128]; tgt2/depth2: [R, 128].

    Returns (abs_partials [num_shards, S] f32, cnt_partials [num_shards, 1] i32)."""
    S, R, _ = pred3.shape
    nblk = pl.cdiv(R, num_shards * tile_r)
    acc_rows = 8 if tile_r % 8 == 0 else tile_r
    covered = num_shards * nblk * tile_r
    need_row_mask = covered != R
    last_blk = max(pl.cdiv(R, tile_r) - 1, 0)

    if num_shards == 1:
        def row_block(sh, rb):
            return rb
        dims = (pltpu.ARBITRARY, pltpu.ARBITRARY)
    else:
        def row_block(sh, rb):
            # Clamp fully out-of-range blocks onto the last real block; the
            # in-kernel row mask (from the *unclamped* index) zeroes them out.
            return jnp.minimum(sh * nblk + rb, last_blk)
        dims = (getattr(pltpu, "CORE_PARALLEL", pltpu.PARALLEL), pltpu.ARBITRARY)

    kernel = functools.partial(
        _masked_l1_kernel, nblk=nblk, tile_r=tile_r, acc_rows=acc_rows,
        rows_total=R, need_count=need_count, need_row_mask=need_row_mask)

    bytes_accessed = (S * pred3.dtype.itemsize + tgt2.dtype.itemsize
                      + depth2.dtype.itemsize) * R * LANE
    flops = 5 * S * R * LANE

    return pl.pallas_call(
        kernel,
        out_shape=(
            jax.ShapeDtypeStruct((num_shards, S), jnp.float32),
            jax.ShapeDtypeStruct((num_shards, 1), jnp.int32),
        ),
        grid_spec=pltpu.PrefetchScalarGridSpec(
            num_scalar_prefetch=0,
            grid=(num_shards, nblk),
            in_specs=[
                pl.BlockSpec((S, tile_r, LANE),
                             lambda sh, rb: (0, row_block(sh, rb), 0)),
                pl.BlockSpec((tile_r, LANE),
                             lambda sh, rb: (row_block(sh, rb), 0)),
                pl.BlockSpec((tile_r, LANE),
                             lambda sh, rb: (row_block(sh, rb), 0)),
            ],
            out_specs=(
                pl.BlockSpec((1, S), lambda sh, rb: (sh, 0),
                             memory_space=pltpu.MemorySpace.SMEM),
                pl.BlockSpec((1, 1), lambda sh, rb: (sh, 0),
                             memory_space=pltpu.MemorySpace.SMEM),
            ),
            scratch_shapes=[
                pltpu.VMEM((S, acc_rows, LANE), jnp.float32),
                pltpu.VMEM((acc_rows, LANE), jnp.int32),
            ],
        ),
        compiler_params=pltpu.CompilerParams(
            dimension_semantics=dims,
            vmem_limit_bytes=_VMEM_LIMIT_BYTES),
        cost_estimate=pl.CostEstimate(flops=flops, transcendentals=0,
                                      bytes_accessed=bytes_accessed),
    )(pred3, tgt2, depth2)


def l1_loss_forward(pred, target, depth_img, loss_weight=1.0, reduction="mean"):
    """pred: [S, N, C, H, W] (stack of predictions, iterated over leading dim),
    target/depth_img: [N, C, H, W]."""
    if reduction not in ("mean", "sum"):
        # TODO(synk): reduction='none' returns the dynamically-shaped gather
        # p[valid_mask]; no static-shape Pallas equivalent.
        raise ValueError(f"Unsupported reduction mode for this kernel: {reduction}")

    S = pred.shape[0]
    flat_p = pred.reshape(S, -1)
    flat_t = target.reshape(-1)
    flat_d = depth_img.reshape(-1)
    if not jnp.issubdtype(flat_d.dtype, jnp.floating):
        flat_d = flat_d.astype(jnp.float32)

    total = flat_t.shape[0]
    rem = total % LANE
    if rem:
        # Rare path: only when #elements is not a multiple of 128 (one extra
        # HBM pass over pred).  Common image shapes take the zero-copy path.
        pad = LANE - rem
        flat_p = jnp.pad(flat_p, ((0, 0), (0, pad)))
        flat_t = jnp.pad(flat_t, ((0, pad),))
        flat_d = jnp.pad(flat_d, ((0, pad),), constant_values=jnp.nan)

    R = flat_t.shape[0] // LANE
    pred3 = flat_p.reshape(S, R, LANE)
    tgt2 = flat_t.reshape(R, LANE)
    depth2 = flat_d.reshape(R, LANE)

    # Tile sizing: fixed large target, capped by a VMEM budget for the
    # double-buffered streams.  Partial last tiles are masked in-kernel.
    per_row = 2 * LANE * (S * pred3.dtype.itemsize + tgt2.dtype.itemsize
                          + depth2.dtype.itemsize)
    cap_rows = max(8, _VMEM_STREAM_BUDGET // per_row)
    if R < 8:
        tile_r = R                      # block equals full dim (allowed)
    else:
        tile_r = min(_TILE_R_TARGET, cap_rows, R)
        tile_r = max(8, (tile_r // 8) * 8)

    num_shards = 1
    if _cores_per_device() >= 2 and R >= 2 * tile_r:
        num_shards = 2                  # split the reduction across TensorCores

    need_count = reduction == "mean"

    def run(ns):
        return _masked_l1_sums(pred3, tgt2, depth2, tile_r=tile_r,
                               num_shards=ns, need_count=need_count)

    try:
        abs_part, cnt_part = run(num_shards)
    except Exception:
        if num_shards == 1:
            raise
        abs_part, cnt_part = run(1)     # safe fallback if core-parallel path fails

    total_abs = jnp.sum(abs_part)       # sum over shards and predictions
    if reduction == "mean":
        # sum_s mean_s == sum_s(abs_sum_s) / count  (count identical per prediction).
        # NOTE: all-NaN depth -> count 0 -> inf/NaN, matching torch's mean over
        # an empty gather.
        cnt = jnp.sum(cnt_part).astype(jnp.float32)
        return loss_weight * total_abs / cnt
    return loss_weight * total_abs      # 'sum'


def _reference(pred, target, depth_img, loss_weight=1.0, reduction="mean"):
    valid = ~jnp.isnan(depth_img)
    vcount = jnp.sum(valid.astype(jnp.float32))
    loss = 0.0
    for s in range(pred.shape[0]):
        diff = jnp.where(valid, jnp.abs(pred[s] - target), 0.0)
        if reduction == "mean":
            loss += loss_weight * jnp.sum(diff) / vcount
        else:
            loss += loss_weight * jnp.sum(diff)
    return loss


def _make_inputs(key, S, N, C, H, W):
    k1, k2, k3, k4 = jax.random.split(key, 4)
    pred = jax.random.normal(k1, (S, N, C, H, W), dtype=jnp.float32)
    target = jax.random.normal(k2, (N, C, H, W), dtype=jnp.float32)
    depth = jax.random.normal(k3, (N, C, H, W), dtype=jnp.float32)
    nan_mask = jax.random.uniform(k4, (N, C, H, W)) < 0.2
    depth = jnp.where(nan_mask, jnp.nan, depth)
    return pred, target, depth


if __name__ == "__main__":
    key = jax.random.PRNGKey(0)
    ka, kb = jax.random.split(key)

    # Case 1: element count divisible by 128 and by the tile (exact-tiling path).
    pred, target, depth = _make_inputs(ka, S=3, N=2, C=1, H=32, W=32)
    loss = jax.block_until_ready(
        l1_loss_forward(pred, target, depth, loss_weight=1.0, reduction="mean"))
    ref = _reference(pred, target, depth, 1.0, "mean")
    assert jnp.allclose(loss, ref, rtol=1e-5, atol=1e-5), (loss, ref)

    loss_sum = jax.block_until_ready(
        l1_loss_forward(pred, target, depth, loss_weight=1.0, reduction="sum"))
    ref_sum = _reference(pred, target, depth, 1.0, "sum")
    assert jnp.allclose(loss_sum, ref_sum, rtol=1e-5, atol=1e-4), (loss_sum, ref_sum)

    # Case 2: element count NOT a multiple of 128 and rows NOT a multiple of the
    # tile (exercises the NaN-pad path and the in-kernel partial-tile row mask).
    pred2, target2, depth2 = _make_inputs(kb, S=2, N=1, C=1, H=33, W=33)
    loss2 = jax.block_until_ready(
        l1_loss_forward(pred2, target2, depth2, loss_weight=0.5, reduction="mean"))
    ref2 = _reference(pred2, target2, depth2, 0.5, "mean")
    assert jnp.allclose(loss2, ref2, rtol=1e-5, atol=1e-5), (loss2, ref2)

    print("KERNEL_OK")
</pallas_src>

<mosaic_0001>
module attributes {stable_mosaic.version = 11 : i64} {
  func.func @_masked_l1_kernel(%arg0: i32, %arg1: i32, %arg2: memref<3x16x128xf32, #tpu.memory_space<vmem>>, %arg3: memref<16x128xf32, #tpu.memory_space<vmem>>, %arg4: memref<16x128xf32, #tpu.memory_space<vmem>>, %arg5: memref<1x3xf32, #tpu.memory_space<smem>>, %arg6: memref<1x1xi32, #tpu.memory_space<smem>>, %arg7: memref<3x8x128xf32, #tpu.memory_space<vmem>>, %arg8: memref<8x128xi32, #tpu.memory_space<vmem>>) attributes {dimension_semantics = [#tpu.dimension_semantics<arbitrary>, #tpu.dimension_semantics<arbitrary>], iteration_bounds = array<i64: 1, 1>, scalar_prefetch = 0 : i64, scratch_operands = 2 : i64, tpu.core_type = #tpu.core_type<tc>, window_params = [{transform_indices = @transform_0, window_bounds = array<i64: 3, 16, 128>}, {transform_indices = @transform_1, window_bounds = array<i64: 16, 128>}, {transform_indices = @transform_2, window_bounds = array<i64: 16, 128>}, {transform_indices = @transform_3, window_bounds = array<i64: 1, 3>}, {transform_indices = @transform_4, window_bounds = array<i64: 1, 1>}]} {
    %c0_i32 = arith.constant 0 : i32
    %0 = arith.cmpi eq, %arg1, %c0_i32 : i32
    %1 = arith.extui %0 : i1 to i32
    %c0_i32_0 = arith.constant 0 : i32
    %2 = arith.cmpi ne, %1, %c0_i32_0 : i32
    scf.if %2 {
      %cst_22 = arith.constant 0.000000e+00 : f32
      %31 = vector.broadcast %cst_22 : f32 to vector<3x8x128xf32>
      %c0_23 = arith.constant 0 : index
      %c0_24 = arith.constant 0 : index
      %c0_25 = arith.constant 0 : index
      %32 = vector.load %arg7[%c0_23, %c0_24, %c0_25] : memref<3x8x128xf32, #tpu.memory_space<vmem>>, vector<3x8x128xf32>
      tpu.vector_store %arg7[%c0_23, %c0_24, %c0_25], %31 {strides = array<i32>} : memref<3x8x128xf32, #tpu.memory_space<vmem>>, vector<3x8x128xf32>,
      %c0_i32_26 = arith.constant 0 : i32
      %33 = vector.broadcast %c0_i32_26 : i32 to vector<8x128xi32>
      %c0_27 = arith.constant 0 : index
      %c0_28 = arith.constant 0 : index
      %34 = vector.load %arg8[%c0_27, %c0_28] : memref<8x128xi32, #tpu.memory_space<vmem>>, vector<8x128xi32>
      tpu.vector_store %arg8[%c0_27, %c0_28], %33 {strides = array<i32>} : memref<8x128xi32, #tpu.memory_space<vmem>>, vector<8x128xi32>,
    } else {
    }
    %c0 = arith.constant 0 : index
    %c0_1 = arith.constant 0 : index
    %3 = vector.load %arg4[%c0, %c0_1] : memref<16x128xf32, #tpu.memory_space<vmem>>, vector<16x128xf32>
    %4 = arith.cmpf one, %3, %3 : vector<16x128xf32>
    %cst = arith.constant dense<true> : vector<16x128xi1>
    %5 = arith.xori %4, %cst : vector<16x128xi1>
    %c0_2 = arith.constant 0 : index
    %c0_3 = arith.constant 0 : index
    %6 = vector.load %arg3[%c0_2, %c0_3] : memref<16x128xf32, #tpu.memory_space<vmem>>, vector<16x128xf32>
    %c0_4 = arith.constant 0 : index
    %c0_5 = arith.constant 0 : index
    %c0_6 = arith.constant 0 : index
    %7 = vector.load %arg2[%c0_4, %c0_5, %c0_6] : memref<3x16x128xf32, #tpu.memory_space<vmem>>, vector<3x16x128xf32>
    %8 = vector.shape_cast %6 : vector<16x128xf32> to vector<1x16x128xf32>
    %9 = vector.broadcast %8 : vector<1x16x128xf32> to vector<3x16x128xf32>
    %10 = arith.subf %7, %9 : vector<3x16x128xf32>
    %11 = math.absf %10 : vector<3x16x128xf32>
    %12 = vector.shape_cast %5 : vector<16x128xi1> to vector<1x16x128xi1>
    %cst_7 = arith.constant 0.000000e+00 : f32
    %13 = vector.shape_cast %12 : vector<1x16x128xi1> to vector<1x16x128xi1>
    %14 = vector.broadcast %13 : vector<1x16x128xi1> to vector<3x16x128xi1>
    %15 = vector.broadcast %cst_7 : f32 to vector<3x16x128xf32>
    %16 = arith.select %14, %11, %15 : vector<3x16x128xi1>, vector<3x16x128xf32>
    %17 = vector.shape_cast %16 : vector<3x16x128xf32> to vector<3x2x8x128xf32>
    %cst_8 = arith.constant dense<0.000000e+00> : vector<3x8x128xf32>
    %18 = vector.multi_reduction <add>, %17, %cst_8 [1] : vector<3x2x8x128xf32> to vector<3x8x128xf32>
    %c0_9 = arith.constant 0 : index
    %c0_10 = arith.constant 0 : index
    %c0_11 = arith.constant 0 : index
    %19 = vector.load %arg7[%c0_9, %c0_10, %c0_11] : memref<3x8x128xf32, #tpu.memory_space<vmem>>, vector<3x8x128xf32>
    %20 = arith.addf %19, %18 : vector<3x8x128xf32>
    %c0_12 = arith.constant 0 : index
    %c0_13 = arith.constant 0 : index
    %c0_14 = arith.constant 0 : index
    %21 = vector.load %arg7[%c0_12, %c0_13, %c0_14] : memref<3x8x128xf32, #tpu.memory_space<vmem>>, vector<3x8x128xf32>
    tpu.vector_store %arg7[%c0_12, %c0_13, %c0_14], %20 {strides = array<i32>} : memref<3x8x128xf32, #tpu.memory_space<vmem>>, vector<3x8x128xf32>,
    %22 = arith.extui %5 : vector<16x128xi1> to vector<16x128xi32>
    %23 = vector.shape_cast %22 : vector<16x128xi32> to vector<2x8x128xi32>
    %cst_15 = arith.constant dense<0> : vector<8x128xi32>
    %24 = vector.multi_reduction <add>, %23, %cst_15 [0] : vector<2x8x128xi32> to vector<8x128xi32>
    %c0_16 = arith.constant 0 : index
    %c0_17 = arith.constant 0 : index
    %25 = vector.load %arg8[%c0_16, %c0_17] : memref<8x128xi32, #tpu.memory_space<vmem>>, vector<8x128xi32>
    %26 = arith.addi %25, %24 : vector<8x128xi32>
    %c0_18 = arith.constant 0 : index
    %c0_19 = arith.constant 0 : index
    %27 = vector.load %arg8[%c0_18, %c0_19] : memref<8x128xi32, #tpu.memory_space<vmem>>, vector<8x128xi32>
    tpu.vector_store %arg8[%c0_18, %c0_19], %26 {strides = array<i32>} : memref<8x128xi32, #tpu.memory_space<vmem>>, vector<8x128xi32>,
    %c0_i32_20 = arith.constant 0 : i32
    %28 = arith.cmpi eq, %arg1, %c0_i32_20 : i32
    %29 = arith.extui %28 : i1 to i32
    %c0_i32_21 = arith.constant 0 : i32
    %30 = arith.cmpi ne, %29, %c0_i32_21 : i32
    scf.if %30 {
      %c0_22 = arith.constant 0 : index
      %c0_23 = arith.constant 0 : index
      %31 = vector.load %arg8[%c0_22, %c0_23] : memref<8x128xi32, #tpu.memory_space<vmem>>, vector<8x128xi32>
      %32 = vector.shape_cast %31 : vector<8x128xi32> to vector<1x8x128xi32>
      %cst_24 = arith.constant dense<0> : vector<1xi32>
      %33 = vector.multi_reduction <add>, %32, %cst_24 [1, 2] : vector<1x8x128xi32> to vector<1xi32>
      %34 = vector.shape_cast %33 : vector<1xi32> to vector<1x1x1xi32>
      %35 = vector.extract %34[0, 0, 0] : i32 from vector<1x1x1xi32>
      %c0_25 = arith.constant 0 : index
      %c0_26 = arith.constant 0 : index
      %36 = memref.load %arg6[%c0_25, %c0_26] : memref<1x1xi32, #tpu.memory_space<smem>>
      memref.store %35, %arg6[%c0_25, %c0_26] : memref<1x1xi32, #tpu.memory_space<smem>>
      %c0_27 = arith.constant 0 : index
      %c0_28 = arith.constant 0 : index
      %c0_29 = arith.constant 0 : index
      %37 = vector.load %arg7[%c0_27, %c0_28, %c0_29] : memref<3x8x128xf32, #tpu.memory_space<vmem>>, vector<1x8x128xf32>
      %38 = vector.shape_cast %37 : vector<1x8x128xf32> to vector<8x128xf32>
      %39 = vector.shape_cast %38 : vector<8x128xf32> to vector<1x8x128xf32>
      %cst_30 = arith.constant dense<0.000000e+00> : vector<1xf32>
      %40 = vector.multi_reduction <add>, %39, %cst_30 [1, 2] : vector<1x8x128xf32> to vector<1xf32>
      %41 = vector.shape_cast %40 : vector<1xf32> to vector<1x1x1xf32>
      %42 = vector.extract %41[0, 0, 0] : f32 from vector<1x1x1xf32>
      %c0_31 = arith.constant 0 : index
      %c0_32 = arith.constant 0 : index
      %43 = memref.load %arg5[%c0_31, %c0_32] : memref<1x3xf32, #tpu.memory_space<smem>>
      memref.store %42, %arg5[%c0_31, %c0_32] : memref<1x3xf32, #tpu.memory_space<smem>>
      %c1 = arith.constant 1 : index
      %c0_33 = arith.constant 0 : index
      %c0_34 = arith.constant 0 : index
      %44 = vector.load %arg7[%c1, %c0_33, %c0_34] : memref<3x8x128xf32, #tpu.memory_space<vmem>>, vector<1x8x128xf32>
      %45 = vector.shape_cast %44 : vector<1x8x128xf32> to vector<8x128xf32>
      %46 = vector.shape_cast %45 : vector<8x128xf32> to vector<1x8x128xf32>
      %cst_35 = arith.constant dense<0.000000e+00> : vector<1xf32>
      %47 = vector.multi_reduction <add>, %46, %cst_35 [1, 2] : vector<1x8x128xf32> to vector<1xf32>
      %48 = vector.shape_cast %47 : vector<1xf32> to vector<1x1x1xf32>
      %49 = vector.extract %48[0, 0, 0] : f32 from vector<1x1x1xf32>
      %c0_36 = arith.constant 0 : index
      %c1_37 = arith.constant 1 : index
      %50 = memref.load %arg5[%c0_36, %c1_37] : memref<1x3xf32, #tpu.memory_space<smem>>
      memref.store %49, %arg5[%c0_36, %c1_37] : memref<1x3xf32, #tpu.memory_space<smem>>
      %c2 = arith.constant 2 : index
      %c0_38 = arith.constant 0 : index
      %c0_39 = arith.constant 0 : index
      %51 = vector.load %arg7[%c2, %c0_38, %c0_39] : memref<3x8x128xf32, #tpu.memory_space<vmem>>, vector<1x8x128xf32>
      %52 = vector.shape_cast %51 : vector<1x8x128xf32> to vector<8x128xf32>
      %53 = vector.shape_cast %52 : vector<8x128xf32> to vector<1x8x128xf32>
      %cst_40 = arith.constant dense<0.000000e+00> : vector<1xf32>
      %54 = vector.multi_reduction <add>, %53, %cst_40 [1, 2] : vector<1x8x128xf32> to vector<1xf32>
      %55 = vector.shape_cast %54 : vector<1xf32> to vector<1x1x1xf32>
      %56 = vector.extract %55[0, 0, 0] : f32 from vector<1x1x1xf32>
      %c0_41 = arith.constant 0 : index
      %c2_42 = arith.constant 2 : index
      %57 = memref.load %arg5[%c0_41, %c2_42] : memref<1x3xf32, #tpu.memory_space<smem>>
      memref.store %56, %arg5[%c0_41, %c2_42] : memref<1x3xf32, #tpu.memory_space<smem>>
    } else {
    }
    return
  }
  func.func @transform_0(%arg0: i32, %arg1: i32) -> (i32, i32, i32) {
    %c0_i32 = arith.constant 0 : i32
    %c0_i32_0 = arith.constant 0 : i32
    %c0_i32_1 = arith.constant 0 : i32
    return %c0_i32, %arg1, %c0_i32_0 : i32, i32, i32
  }
  func.func @transform_1(%arg0: i32, %arg1: i32) -> (i32, i32) {
    %c0_i32 = arith.constant 0 : i32
    %c0_i32_0 = arith.constant 0 : i32
    return %arg1, %c0_i32 : i32, i32
  }
  func.func @transform_2(%arg0: i32, %arg1: i32) -> (i32, i32) {
    %c0_i32 = arith.constant 0 : i32
    %c0_i32_0 = arith.constant 0 : i32
    return %arg1, %c0_i32 : i32, i32
  }
  func.func @transform_3(%arg0: i32, %arg1: i32) -> (i32, i32) {
    %c0_i32 = arith.constant 0 : i32
    %c0_i32_0 = arith.constant 0 : i32
    return %arg0, %c0_i32 : i32, i32
  }
  func.func @transform_4(%arg0: i32, %arg1: i32) -> (i32, i32) {
    %c0_i32 = arith.constant 0 : i32
    %c0_i32_0 = arith.constant 0 : i32
    return %arg0, %c0_i32 : i32, i32
  }
}

</mosaic_0001>

<llo_original>
// kernel: tpu_custom_call.1
$region0: #{tpu_custom_call.1}
  #allocation0 [shape = 'u32[]', space=smem, size = 0x4, offset = 0x4, fixed_abs, tag = 'smem constant byte address 0x4 - core index']
  #allocation1 [shape = 'u32[144,128]{1,0:T(1,128)}', space=vmem, size = 0x12000, scoped, tag = 'internal scratch']
  #allocation2 [shape = 'f32[3,8,128]{2,1,0:T(8,128)}', space=vmem, size = 0x3000, scoped, tag = 'scratch operand']
  #allocation3 [shape = 's32[8,128]{1,0:T(8,128)}', space=vmem, size = 0x1000, scoped, tag = 'scratch operand']
  %s0 = inlined_call_operand.hbm [shape: f32[3,16,128], index: 0, kind: input, shape index: {}]
  %s1 = inlined_call_operand.hbm [shape: f32[16,128], index: 1, kind: input, shape index: {}]
  %s2 = inlined_call_operand.hbm [shape: f32[16,128], index: 2, kind: input, shape index: {}]
  %s3 = inlined_call_operand.hbm [shape: f32[1,3], index: 3, kind: output, shape index: {0}]
  %s4 = inlined_call_operand.hbm [shape: s32[1,1], index: 4, kind: output, shape index: {1}]
  %5 = xla_tuple %s3, %s4
  %s6 = sld [smem:[#allocation0]]
  $region50: #{tpu_custom_call.1} parent=0
    _
  %s8 = ssub.s32 1, %s6
  %s9 = scalar_select 0, %s8, %s6
  $region1: #{tpu_custom_call.1} parent=0
    #allocation4 [shape = 'u8[24576]{0}', space=vmem, size = 0x6000, scoped, tag = 'input window, operand 0, single buffered']
    #allocation5 [shape = 's32[1]{0}', space=sflag, size = 0x4, scoped, tag = 'scoped memory for tpu_custom_call.1']
    #allocation6 [shape = 's32[1]{0}', space=sflag, size = 0x4, scoped, tag = 'scoped memory for tpu_custom_call.1']
    #allocation7 [shape = 'u8[8192]{0}', space=vmem, size = 0x2000, scoped, tag = 'input window, operand 1, single buffered']
    #allocation8 [shape = 's32[1]{0}', space=sflag, size = 0x4, scoped, tag = 'scoped memory for tpu_custom_call.1']
    #allocation9 [shape = 'u8[8192]{0}', space=vmem, size = 0x2000, scoped, tag = 'input window, operand 2, single buffered']
    #allocation10 [shape = 'u8[512]{0}', space=smem, size = 0x200, scoped, tag = 'output window, operand 0, single buffered']
    #allocation11 [shape = 'u8[512]{0}', space=smem, size = 0x200, scoped, tag = 'output window, operand 1, single buffered']
    #allocation12 [shape = 's32[1]{0}', space=sflag, size = 0x4, scoped, tag = 'scoped memory for tpu_custom_call.1']
    %10 = vsyncpa [#allocation5], 0
    %11 = vsyncpa [#allocation8], 0
    %12 = vsyncpa [#allocation6], 0
    %13 = vsyncpa [#allocation12], 0
    // Predicated region
    $region2: #{tpu_custom_call.1} parent=1 // pred_check
      _
    $region3: #{tpu_custom_call.1} parent=1 // pred_check_branch
      %15 = sbr.rel (0) target = $region5
    $region4: #{tpu_custom_call.1} parent=1 // pred_region
      %s17 = ssub.s32 768, 768
      %18 = vsyncadd [#allocation5], %s17
      %s19 = sshll.u32 [#allocation4], 4
      %s20 = int_to_ptr.vmem [resolvable:$true] %s19
      %25 = dma.hbm_to_vmem [thread:$0]  %s0, 768, %s20, [#allocation5], 128, 128, 8
    $region5: #{tpu_custom_call.1} parent=1 // pred_fallthru
      _
    // Predicated region
    $region6: #{tpu_custom_call.1} parent=1 // pred_check
      _
    $region7: #{tpu_custom_call.1} parent=1 // pred_check_branch
      %27 = sbr.rel (0) target = $region9
    $region8: #{tpu_custom_call.1} parent=1 // pred_region
      %s29 = ssub.s32 256, 256
      %30 = vsyncadd [#allocation8], %s29
      %s31 = sshll.u32 [#allocation7], 4
      %s32 = int_to_ptr.vmem [resolvable:$true] %s31
      %37 = dma.hbm_to_vmem [thread:$0]  %s1, 256, %s32, [#allocation8], 128, 128, 8
    $region9: #{tpu_custom_call.1} parent=1 // pred_fallthru
      _
    // Predicated region
    $region10: #{tpu_custom_call.1} parent=1 // pred_check
      _
    $region11: #{tpu_custom_call.1} parent=1 // pred_check_branch
      %39 = sbr.rel (0) target = $region13
    $region12: #{tpu_custom_call.1} parent=1 // pred_region
      %s41 = ssub.s32 256, 256
      %42 = vsyncadd [#allocation8], %s41
      %s43 = sshll.u32 [#allocation9], 4
      %s44 = int_to_ptr.vmem [resolvable:$true] %s43
      %49 = dma.hbm_to_vmem [thread:$0]  %s2, 256, %s44, [#allocation8], 128, 128, 8
    $region13: #{tpu_custom_call.1} parent=1 // pred_fallthru
      _
    // Predicated region
    $region14: #{tpu_custom_call.1} parent=1 // pred_check
      _
    $region15: #{tpu_custom_call.1} parent=1 // pred_check_branch
      %51 = sbr.rel (0) target = $region17
    $region16: #{tpu_custom_call.1} parent=1 // pred_region
      %52 = dma.done [#allocation5], 768
    $region17: #{tpu_custom_call.1} parent=1 // pred_fallthru
      _
    // Predicated region
    $region18: #{tpu_custom_call.1} parent=1 // pred_check
      _
    $region19: #{tpu_custom_call.1} parent=1 // pred_check_branch
      %54 = sbr.rel (0) target = $region21
    $region20: #{tpu_custom_call.1} parent=1 // pred_region
      %55 = dma.done [#allocation8], 256
    $region21: #{tpu_custom_call.1} parent=1 // pred_fallthru
      _
    // Predicated region
    $region22: #{tpu_custom_call.1} parent=1 // pred_check
      _
    $region23: #{tpu_custom_call.1} parent=1 // pred_check_branch
      %57 = sbr.rel (0) target = $region25
    $region24: #{tpu_custom_call.1} parent=1 // pred_region
      %58 = dma.done [#allocation8], 256
    $region25: #{tpu_custom_call.1} parent=1 // pred_fallthru
      _
    %p59 = scmp.eq.s32.totalorder 0, 0
    // Predicated region
    $region26: #{tpu_custom_call.1} parent=1 // pred_check
      %p60 = pneg %p59
    $region27: #{tpu_custom_call.1} parent=1 // pred_check_branch
      %62 = sbr.rel (%p60) target = $region29
    $region28: #{tpu_custom_call.1} parent=1 // pred_region
      %63 = vst [vmem:[#allocation2] sm:$0xff] 0.0
      %64 = vst [vmem:[#allocation2 + $0x8] sm:$0xff] 0.0
      %65 = vst [vmem:[#allocation2 + $0x10] sm:$0xff] 0.0
      %66 = vst [vmem:[#allocation3] sm:$0xff] 0
    $region29: #{tpu_custom_call.1} parent=1 // pred_fallthru
      _
    %v67 = vld [vmem:[#allocation9] sm:$0xff]
    %v68 = vld [vmem:[#allocation9 + $0x8] sm:$0xff]
    %vm69 = vcmp.ne.f32.partialorder %v67, %v67
    %vm70 = vcmp.ne.f32.partialorder %v68, %v68
    %vm71 = vmxor %vm69, 1
    %vm72 = vmxor %vm70, 1
    %v73 = vld [vmem:[#allocation7] sm:$0xff]
    %v74 = vld [vmem:[#allocation7 + $0x8] sm:$0xff]
    %v75 = vld [vmem:[#allocation4] sm:$0xff]
    %v76 = vld [vmem:[#allocation4 + $0x8] sm:$0xff]
    %v77 = vld [vmem:[#allocation4 + $0x10] sm:$0xff]
    %v78 = vld [vmem:[#allocation4 + $0x18] sm:$0xff]
    %v79 = vld [vmem:[#allocation4 + $0x20] sm:$0xff]
    %v80 = vld [vmem:[#allocation4 + $0x28] sm:$0xff]
    %v81 = vsub.f32 %v75, %v73
    %v82 = vsub.f32 %v76, %v74
    %v83 = vsub.f32 %v77, %v73
    %v84 = vsub.f32 %v78, %v74
    %v85 = vsub.f32 %v79, %v73
    %v86 = vsub.f32 %v80, %v74
    %v87 = vand.u32 2147483647, %v81
    %v88 = vand.u32 2147483647, %v82
    %v89 = vand.u32 2147483647, %v83
    %v90 = vand.u32 2147483647, %v84
    %v91 = vand.u32 2147483647, %v85
    %v92 = vand.u32 2147483647, %v86
    %v93 = vsel %vm71, 1, 0
    %v94 = vsel %vm72, 1, 0
    %vm95 = vcmp.eq.s32.totalorder %v93, 1
    %vm96 = vcmp.eq.s32.totalorder %v94, 1
    %v97 = vsel %vm95, %v87, 0.0
    %v98 = vsel %vm96, %v88, 0.0
    %v99 = vsel %vm95, %v89, 0.0
    %v100 = vsel %vm96, %v90, 0.0
    %v101 = vsel %vm95, %v91, 0.0
    %v102 = vsel %vm96, %v92, 0.0
    %v103 = vadd.f32 %v97, %v98
    %v104 = vadd.f32 %v99, %v100
    %v105 = vadd.f32 %v101, %v102
    %v106 = vld [vmem:[#allocation2] sm:$0xff]
    %v107 = vld [vmem:[#allocation2 + $0x8] sm:$0xff]
    %v108 = vld [vmem:[#allocation2 + $0x10] sm:$0xff]
    %v109 = vadd.f32 %v106, %v103
    %v110 = vadd.f32 %v107, %v104
    %v111 = vadd.f32 %v108, %v105
    %112 = vst [vmem:[#allocation2] sm:$0xff] %v109
    %113 = vst [vmem:[#allocation2 + $0x8] sm:$0xff] %v110
    %114 = vst [vmem:[#allocation2 + $0x10] sm:$0xff] %v111
    %v115 = vadd.s32 %v93, %v94
    %v116 = vld [vmem:[#allocation3] sm:$0xff]
    %v117 = vadd.s32 %v116, %v115
    %118 = vst [vmem:[#allocation3] sm:$0xff] %v117
    // Predicated region
    $region30: #{tpu_custom_call.1} parent=1 // pred_check
      %p119 = pneg %p59
    $region31: #{tpu_custom_call.1} parent=1 // pred_check_branch
      %121 = sbr.rel (%p119) target = $region33
    $region32: #{tpu_custom_call.1} parent=1 // pred_region
      %v122 = vld [vmem:[#allocation3] sm:$0xff]
      %v123 = vand.u32 %v122, 65535
      %v124 = vshrl.u32 %v122, 16
      %v125 = vcvt.s32.f32 %v123
      %v126 = vcvt.s32.f32 %v124
      %127 = vadd.xlane.f32.xlu0 %v125
      %v128 = vpop.xlane.xlu0 %127
      %129 = vadd.xlane.f32.xlu0 %v126
      %v130 = vpop.xlane.xlu0 %129
      %v131 = vcvt.f32.s32 %v128
      %v132 = vcvt.f32.s32 %v130
      %v133 = vshll.u32 %v132, 16
      %v134 = vadd.s32 %v133, %v131
      %v135 = vrot.slane %v134, 4
      %v136 = vadd.s32 %v134, %v135
      %v137 = vrot.slane %v136, 2
      %v138 = vadd.s32 %v136, %v137
      %v139 = vrot.slane %v138, 1
      %v140 = vadd.s32 %v138, %v139
      %s141 = vtos %v140
      %s142 = scalar_lea.smem [#allocation11], 0
      %143 = sst [smem:[%s142]] %s141
      %v144 = vld [vmem:[#allocation2] sm:$0xff]
      %145 = vadd.xlane.f32.xlu0 %v144
      %v146 = vpop.xlane.xlu0 %145
      %v147 = vrot.slane %v146, 4
      %v148 = vadd.f32 %v146, %v147
      %v149 = vrot.slane %v148, 2
      %v150 = vadd.f32 %v148, %v149
      %v151 = vrot.slane %v150, 1
      %v152 = vadd.f32 %v150, %v151
      %s153 = vtos %v152
      %s154 = scalar_lea.smem [#allocation10], 0
      %155 = sst [smem:[%s154]] %s153
      %s156 = scalar_lea.vmem [#allocation2], 8
      %v157 = vld [vmem:[%s156] sm:$0xff]
      %158 = vadd.xlane.f32.xlu0 %v157
      %v159 = vpop.xlane.xlu0 %158
      %v160 = vrot.slane %v159, 4
      %v161 = vadd.f32 %v159, %v160
      %v162 = vrot.slane %v161, 2
      %v163 = vadd.f32 %v161, %v162
      %v164 = vrot.slane %v163, 1
      %v165 = vadd.f32 %v163, %v164
      %s166 = vtos %v165
      %s167 = scalar_lea.smem [#allocation10], 1
      %168 = sst [smem:[%s167]] %s166
      %s169 = scalar_lea.vmem [#allocation2], 16
      %v170 = vld [vmem:[%s169] sm:$0xff]
      %171 = vadd.xlane.f32.xlu0 %v170
      %v172 = vpop.xlane.xlu0 %171
      %v173 = vrot.slane %v172, 4
      %v174 = vadd.f32 %v172, %v173
      %v175 = vrot.slane %v174, 2
      %v176 = vadd.f32 %v174, %v175
      %v177 = vrot.slane %v176, 1
      %v178 = vadd.f32 %v176, %v177
      %s179 = vtos %v178
      %s180 = scalar_lea.smem [#allocation10], 2
      %181 = sst [smem:[%s180]] %s179
    $region33: #{tpu_custom_call.1} parent=1 // pred_fallthru
      _
    // Predicated region
    $region34: #{tpu_custom_call.1} parent=1 // pred_check
      _
    $region35: #{tpu_custom_call.1} parent=1 // pred_check_branch
      %183 = sbr.rel (0) target = $region37
    $region36: #{tpu_custom_call.1} parent=1 // pred_region
      %s185 = ssub.s32 16, 16
      %186 = vsyncadd [#allocation6], %s185
      %189 = dma.smem_to_hbm [#allocation10], 16, %s3, [#allocation6]
    $region37: #{tpu_custom_call.1} parent=1 // pred_fallthru
      _
    // Predicated region
    $region38: #{tpu_custom_call.1} parent=1 // pred_check
      _
    $region39: #{tpu_custom_call.1} parent=1 // pred_check_branch
      %191 = sbr.rel (0) target = $region41
    $region40: #{tpu_custom_call.1} parent=1 // pred_region
      %s193 = ssub.s32 16, 16
      %194 = vsyncadd [#allocation12], %s193
      %197 = dma.smem_to_hbm [#allocation11], 16, %s4, [#allocation12]
    $region41: #{tpu_custom_call.1} parent=1 // pred_fallthru
      _
    // Predicated region
    $region42: #{tpu_custom_call.1} parent=1 // pred_check
      _
    $region43: #{tpu_custom_call.1} parent=1 // pred_check_branch
      %199 = sbr.rel (0) target = $region45
    $region44: #{tpu_custom_call.1} parent=1 // pred_region
      %200 = dma.done [#allocation6], 16
    $region45: #{tpu_custom_call.1} parent=1 // pred_fallthru
      _
    // Predicated region
    $region46: #{tpu_custom_call.1} parent=1 // pred_check
      _
    $region47: #{tpu_custom_call.1} parent=1 // pred_check_branch
      %202 = sbr.rel (0) target = $region49
    $region48: #{tpu_custom_call.1} parent=1 // pred_region
      %203 = dma.done [#allocation12], 16
    $region49: #{tpu_custom_call.1} parent=1 // pred_fallthru
      _
    %204 = sfence
    %205 = vsyncpa [#allocation5], 1
    %206 = vsyncpa [#allocation8], 1
    %207 = vsyncpa [#allocation6], 1
    %208 = vsyncpa [#allocation12], 1

</llo_original>
